<compile_context>
chip_gen: v5e
topology: v5e:2x2
jax: 0.10.0
libtpu: 0.0.40
codegen_flags: <defaults>
</compile_context>

<pallas_src>
import functools

import jax
import jax.numpy as jnp
from jax.experimental import pallas as pl
from jax.experimental.pallas import tpu as pltpu


def _dual_function_kernel(nb_layers, f0, ls, n_slabs, *refs):
    """One batch tile per grid step, processed in lane slabs of width `ls`.

    refs = (x_ref, w_0_ref, ..., w_{L-1}_ref, wf_ref, out_ref, h_ref)
      x_ref  : (f0, b_tile)        input bias columns for this batch tile
      w_l    : (32, f0 + 32*l)     GomoryLayer weights (VMEM-resident)
      wf_ref : (f0 + 32*L, 1)      final LinearLayer weight, as a column
      out_ref: (1, b_tile)
      h_ref  : (f0 + 32*L, ls)     feature-stack scratch, reused per slab
    """
    x_ref = refs[0]
    w_refs = refs[1:1 + nb_layers]
    wf_ref = refs[1 + nb_layers]
    out_ref = refs[2 + nb_layers]
    h_ref = refs[3 + nb_layers]

    # Static, fully-unrolled slab loop: all slice offsets are compile-time
    # constants and sublane/lane aligned.
    for c in range(n_slabs):
        col = c * ls
        x_s = x_ref[:, col:col + ls].astype(jnp.float32)          # (f0, ls)
        h_ref[0:f0, :] = x_s

        # Fused final-layer contribution of the raw bias rows (VPU + sublane sum,
        # keeps the MXU free for the Gomory matmuls).
        acc = jnp.sum(wf_ref[0:f0, :] * x_s, axis=0, keepdims=True)  # (1, ls)

        # GomoryLayer + Cat, in place: g_l = ceil(W_l @ h_prefix) written into
        # the next 32 rows of the scratch (8-sublane aligned), plus its fused
        # contribution to the final linear layer while g is still hot.
        for l in range(nb_layers):
            f_in = f0 + 32 * l
            g = jnp.ceil(
                jnp.dot(w_refs[l][...], h_ref[0:f_in, :],
                        preferred_element_type=jnp.float32)
            )                                                        # (32, ls)
            h_ref[f_in:f_in + 32, :] = g
            acc = acc + jnp.sum(wf_ref[f_in:f_in + 32, :] * g,
                                axis=0, keepdims=True)

        out_ref[:, col:col + ls] = acc


def dual_function(bias, layer_weights, final_weight, *, b_tile=2048):
    """bias: (F0, B) f32; layer_weights: list of (32, F0+32*l); final_weight: (1, F0+32*L)."""
    F0, B = bias.shape
    L = len(layer_weights)

    # --- feature padding: F0 -> multiple of 8 so all scratch stores are
    #     full sublane tiles (zero columns inserted into the matching weight
    #     positions keep the math identical).
    F0p = 8 * pl.cdiv(F0, 8)
    if F0p != F0:
        fpad = F0p - F0
        bias = jnp.pad(bias, ((0, fpad), (0, 0)))

        def _insert_zero_cols(w):
            return jnp.concatenate(
                [w[:, :F0], jnp.zeros((w.shape[0], fpad), w.dtype), w[:, F0:]],
                axis=1)

        layer_weights = [_insert_zero_cols(w) for w in layer_weights]
        final_weight = _insert_zero_cols(final_weight)
    F_total = F0p + 32 * L

    # --- batch tiling: big lane-dense tiles; when more than one tile is needed,
    #     force an even tile count so v7x's two TensorCores are balanced.
    B_round = 128 * pl.cdiv(B, 128)
    if B_round <= b_tile:
        num_tiles = 1
        b_tile = B_round
    else:
        num_tiles = pl.cdiv(B_round, b_tile)
        if num_tiles % 2:
            num_tiles += 1
        b_tile = 128 * pl.cdiv(pl.cdiv(B, num_tiles), 128)
    B_pad = num_tiles * b_tile
    bias_p = bias if B_pad == B else jnp.pad(bias, ((0, 0), (0, B_pad - B)))

    # --- in-kernel lane slab width (<=512 columns keeps vreg pressure bounded
    #     even at large b_tile); always divides b_tile (which is a mult. of 128).
    ls = 512
    while b_tile % ls:
        ls //= 2
    n_slabs = b_tile // ls

    wf_col = final_weight.astype(jnp.float32).reshape(F_total, 1)
    layer_weights = [w.astype(jnp.float32) for w in layer_weights]

    kernel = functools.partial(_dual_function_kernel, L, F0p, ls, n_slabs)

    in_specs = (
        # batch-tiled input bias
        [pl.BlockSpec((F0p, b_tile), lambda i: (0, i))]
        # weights: constant block index -> VMEM-resident, no per-tile re-DMA
        + [pl.BlockSpec(w.shape, lambda i: (0, 0)) for w in layer_weights]
        + [pl.BlockSpec((F_total, 1), lambda i: (0, 0))]
    )

    out = pl.pallas_call(
        kernel,
        out_shape=jax.ShapeDtypeStruct((1, B_pad), jnp.float32),
        grid=(num_tiles,),
        in_specs=in_specs,
        out_specs=pl.BlockSpec((1, b_tile), lambda i: (0, i)),
        scratch_shapes=[pltpu.VMEM((F_total, ls), jnp.float32)],
        compiler_params=pltpu.CompilerParams(
            dimension_semantics=("parallel",),   # batch tiles split across v7x's 2 TCs
        ),
    )(bias_p.astype(jnp.float32), *layer_weights, wf_col)

    # drop batch padding; matches torch's `.squeeze(0)` on the (1, B) result
    return out[0, :B]


def _reference(bias, layer_weights, final_weight):
    """Pure-JAX reference of the same forward pass."""
    h = bias.astype(jnp.float32)
    for w in layer_weights:
        g = jnp.ceil(w @ h)
        h = jnp.concatenate([h, g], axis=0)
    return (final_weight @ h).squeeze(0)


if __name__ == "__main__":
    INPUT_SIZE = 32   # features of the `bias` vector
    NB_LAYERS = 2     # DualFunction(input_size=32, nb_layers=2)
    BATCH = 8         # number of bias vectors evaluated at once

    key = jax.random.PRNGKey(0)
    k_bias, *k_ws = jax.random.split(key, 2 + NB_LAYERS)

    bias = jax.random.uniform(k_bias, (INPUT_SIZE, BATCH),
                              dtype=jnp.float32, minval=-2.0, maxval=2.0)
    layer_weights = [
        jax.random.uniform(k_ws[l], (32, INPUT_SIZE + 32 * l),
                           dtype=jnp.float32, minval=0.0, maxval=1.0)
        for l in range(NB_LAYERS)
    ]
    final_weight = jax.random.uniform(k_ws[NB_LAYERS],
                                      (1, INPUT_SIZE + 32 * NB_LAYERS),
                                      dtype=jnp.float32, minval=0.0, maxval=1.0)

    out = dual_function(bias, layer_weights, final_weight)
    out = jax.block_until_ready(out)

    ref = _reference(bias, layer_weights, final_weight)
    assert out.shape == (BATCH,), out.shape
    # NOTE: ceil() is discontinuous; inputs landing within ~1 ulp of an integer
    # could legitimately differ from the reference by +-1. Random uniform test
    # inputs stay clear of that regime.
    assert jnp.allclose(out, ref, rtol=1e-5, atol=1e-5), (out, ref)

    print("KERNEL_OK")
</pallas_src>

<mosaic_0001>
module attributes {stable_mosaic.version = 11 : i64} {
  func.func @_dual_function_kernel(%arg0: i32, %arg1: memref<32x128xf32, #tpu.memory_space<vmem>>, %arg2: memref<32x32xf32, #tpu.memory_space<vmem>>, %arg3: memref<32x64xf32, #tpu.memory_space<vmem>>, %arg4: memref<96x1xf32, #tpu.memory_space<vmem>>, %arg5: memref<1x128xf32, #tpu.memory_space<vmem>>, %arg6: memref<96x128xf32, #tpu.memory_space<vmem>>) attributes {dimension_semantics = [#tpu.dimension_semantics<parallel>], iteration_bounds = array<i64: 1>, scalar_prefetch = 0 : i64, scratch_operands = 1 : i64, tpu.core_type = #tpu.core_type<tc>, window_params = [{transform_indices = @transform_0, window_bounds = array<i64: 32, 128>}, {pipeline_mode = #tpu.pipeline_mode<synchronous>, transform_indices = @transform_1, window_bounds = array<i64: 32, 32>}, {pipeline_mode = #tpu.pipeline_mode<synchronous>, transform_indices = @transform_2, window_bounds = array<i64: 32, 64>}, {pipeline_mode = #tpu.pipeline_mode<synchronous>, transform_indices = @transform_3, window_bounds = array<i64: 96, 1>}, {transform_indices = @transform_4, window_bounds = array<i64: 1, 128>}]} {
    %c0 = arith.constant 0 : index
    %c0_0 = arith.constant 0 : index
    %0 = vector.load %arg1[%c0, %c0_0] : memref<32x128xf32, #tpu.memory_space<vmem>>, vector<32x128xf32>
    %c0_1 = arith.constant 0 : index
    %c0_2 = arith.constant 0 : index
    %1 = vector.load %arg6[%c0_1, %c0_2] : memref<96x128xf32, #tpu.memory_space<vmem>>, vector<32x128xf32>
    tpu.vector_store %arg6[%c0_1, %c0_2], %0 {strides = array<i32>} : memref<96x128xf32, #tpu.memory_space<vmem>>, vector<32x128xf32>,
    %c0_3 = arith.constant 0 : index
    %c0_4 = arith.constant 0 : index
    %2 = vector.load %arg4[%c0_3, %c0_4] : memref<96x1xf32, #tpu.memory_space<vmem>>, vector<32x1xf32>
    %3 = vector.broadcast %2 : vector<32x1xf32> to vector<32x128xf32>
    %4 = arith.mulf %3, %0 : vector<32x128xf32>
    %cst = arith.constant dense<0.000000e+00> : vector<128xf32>
    %5 = vector.multi_reduction <add>, %4, %cst [0] : vector<32x128xf32> to vector<128xf32>
    %6 = vector.shape_cast %5 : vector<128xf32> to vector<1x128xf32>
    %c0_5 = arith.constant 0 : index
    %c0_6 = arith.constant 0 : index
    %7 = vector.load %arg2[%c0_5, %c0_6] : memref<32x32xf32, #tpu.memory_space<vmem>>, vector<32x32xf32>
    %c0_7 = arith.constant 0 : index
    %c0_8 = arith.constant 0 : index
    %8 = vector.load %arg6[%c0_7, %c0_8] : memref<96x128xf32, #tpu.memory_space<vmem>>, vector<32x128xf32>
    %cst_9 = arith.constant dense<0.000000e+00> : vector<32x128xf32>
    %9 = tpu.matmul %7, %8, %cst_9 {dimension_numbers = #tpu.dot_dimension_numbers<[1], [0], [0], [1], [0, 0, 1, 1], [], []>} : vector<32x32xf32>, vector<32x128xf32>, vector<32x128xf32> -> vector<32x128xf32>
    %10 = math.ceil %9 : vector<32x128xf32>
    %c32 = arith.constant 32 : index
    %c0_10 = arith.constant 0 : index
    %11 = vector.load %arg6[%c32, %c0_10] : memref<96x128xf32, #tpu.memory_space<vmem>>, vector<32x128xf32>
    tpu.vector_store %arg6[%c32, %c0_10], %10 {strides = array<i32>} : memref<96x128xf32, #tpu.memory_space<vmem>>, vector<32x128xf32>,
    %c32_11 = arith.constant 32 : index
    %c0_12 = arith.constant 0 : index
    %12 = vector.load %arg4[%c32_11, %c0_12] : memref<96x1xf32, #tpu.memory_space<vmem>>, vector<32x1xf32>
    %13 = vector.broadcast %12 : vector<32x1xf32> to vector<32x128xf32>
    %14 = arith.mulf %13, %10 : vector<32x128xf32>
    %cst_13 = arith.constant dense<0.000000e+00> : vector<128xf32>
    %15 = vector.multi_reduction <add>, %14, %cst_13 [0] : vector<32x128xf32> to vector<128xf32>
    %16 = vector.shape_cast %15 : vector<128xf32> to vector<1x128xf32>
    %17 = arith.addf %6, %16 : vector<1x128xf32>
    %c0_14 = arith.constant 0 : index
    %c0_15 = arith.constant 0 : index
    %18 = vector.load %arg3[%c0_14, %c0_15] : memref<32x64xf32, #tpu.memory_space<vmem>>, vector<32x64xf32>
    %c0_16 = arith.constant 0 : index
    %c0_17 = arith.constant 0 : index
    %19 = vector.load %arg6[%c0_16, %c0_17] : memref<96x128xf32, #tpu.memory_space<vmem>>, vector<64x128xf32>
    %cst_18 = arith.constant dense<0.000000e+00> : vector<32x128xf32>
    %20 = tpu.matmul %18, %19, %cst_18 {dimension_numbers = #tpu.dot_dimension_numbers<[1], [0], [0], [1], [0, 0, 1, 1], [], []>} : vector<32x64xf32>, vector<64x128xf32>, vector<32x128xf32> -> vector<32x128xf32>
    %21 = math.ceil %20 : vector<32x128xf32>
    %c64 = arith.constant 64 : index
    %c0_19 = arith.constant 0 : index
    %22 = vector.load %arg6[%c64, %c0_19] : memref<96x128xf32, #tpu.memory_space<vmem>>, vector<32x128xf32>
    tpu.vector_store %arg6[%c64, %c0_19], %21 {strides = array<i32>} : memref<96x128xf32, #tpu.memory_space<vmem>>, vector<32x128xf32>,
    %c64_20 = arith.constant 64 : index
    %c0_21 = arith.constant 0 : index
    %23 = vector.load %arg4[%c64_20, %c0_21] : memref<96x1xf32, #tpu.memory_space<vmem>>, vector<32x1xf32>
    %24 = vector.broadcast %23 : vector<32x1xf32> to vector<32x128xf32>
    %25 = arith.mulf %24, %21 : vector<32x128xf32>
    %cst_22 = arith.constant dense<0.000000e+00> : vector<128xf32>
    %26 = vector.multi_reduction <add>, %25, %cst_22 [0] : vector<32x128xf32> to vector<128xf32>
    %27 = vector.shape_cast %26 : vector<128xf32> to vector<1x128xf32>
    %28 = arith.addf %17, %27 : vector<1x128xf32>
    %c0_23 = arith.constant 0 : index
    %c0_24 = arith.constant 0 : index
    %29 = vector.load %arg5[%c0_23, %c0_24] : memref<1x128xf32, #tpu.memory_space<vmem>>, vector<1x128xf32>
    tpu.vector_store %arg5[%c0_23, %c0_24], %28 {strides = array<i32>} : memref<1x128xf32, #tpu.memory_space<vmem>>, vector<1x128xf32>,
    return
  }
  func.func @transform_0(%arg0: i32) -> (i32, i32) {
    %c0_i32 = arith.constant 0 : i32
    %c0_i32_0 = arith.constant 0 : i32
    return %c0_i32, %arg0 : i32, i32
  }
  func.func @transform_1(%arg0: i32) -> (i32, i32) {
    %c0_i32 = arith.constant 0 : i32
    %c0_i32_0 = arith.constant 0 : i32
    %c0_i32_1 = arith.constant 0 : i32
    return %c0_i32, %c0_i32_0 : i32, i32
  }
  func.func @transform_2(%arg0: i32) -> (i32, i32) {
    %c0_i32 = arith.constant 0 : i32
    %c0_i32_0 = arith.constant 0 : i32
    %c0_i32_1 = arith.constant 0 : i32
    return %c0_i32, %c0_i32_0 : i32, i32
  }
  func.func @transform_3(%arg0: i32) -> (i32, i32) {
    %c0_i32 = arith.constant 0 : i32
    %c0_i32_0 = arith.constant 0 : i32
    %c0_i32_1 = arith.constant 0 : i32
    return %c0_i32, %c0_i32_0 : i32, i32
  }
  func.func @transform_4(%arg0: i32) -> (i32, i32) {
    %c0_i32 = arith.constant 0 : i32
    %c0_i32_0 = arith.constant 0 : i32
    return %c0_i32, %arg0 : i32, i32
  }
}

</mosaic_0001>

<llo_original>
// kernel: tpu_custom_call.1
$region0: #{tpu_custom_call.1}
  #allocation0 [shape = 'u32[]', space=smem, size = 0x4, offset = 0x4, fixed_abs, tag = 'smem constant byte address 0x4 - core index']
  #allocation1 [shape = 'u32[72,128]{1,0:T(1,128)}', space=vmem, size = 0x9000, scoped, tag = 'internal scratch']
  #allocation2 [shape = 'f32[96,128]{1,0:T(8,128)}', space=vmem, size = 0xc000, scoped, tag = 'scratch operand']
  %s0 = inlined_call_operand.vmem [shape: f32[32,128], index: 0, kind: input, shape index: {}]
  %s1 = inlined_call_operand.vmem [shape: f32[32,32], index: 1, kind: input, shape index: {}]
  %s2 = inlined_call_operand.vmem [shape: f32[32,64], index: 2, kind: input, shape index: {}]
  %s3 = inlined_call_operand.vmem [shape: f32[96,1], index: 3, kind: input, shape index: {}]
  %s4 = inlined_call_operand.hbm [shape: f32[1,128], index: 4, kind: output, shape index: {}]
  %s5 = sld [smem:[#allocation0]]
  $region26: #{tpu_custom_call.1} parent=0
    _
  %s7 = ssub.s32 1, %s5
  %s8 = scalar_select 0, %s7, %s5
  $region1: #{tpu_custom_call.1} parent=0
    #allocation3 [shape = 'u8[512]{0}', space=vmem, size = 0x400, scoped, tag = 'output window, operand 0, single buffered']
    #allocation4 [shape = 's32[1]{0}', space=sflag, size = 0x4, scoped, tag = 'scoped memory for tpu_custom_call.1']
    %9 = vsyncpa [#allocation4], 0
    // Predicated region
    $region2: #{tpu_custom_call.1} parent=1 // pred_check
      _
    $region3: #{tpu_custom_call.1} parent=1 // pred_check_branch
      %11 = sbr.rel (0) target = $region5
    $region4: #{tpu_custom_call.1} parent=1 // pred_region
      _
    $region5: #{tpu_custom_call.1} parent=1 // pred_fallthru
      _
    // Predicated region
    $region6: #{tpu_custom_call.1} parent=1 // pred_check
      _
    $region7: #{tpu_custom_call.1} parent=1 // pred_check_branch
      %13 = sbr.rel (0) target = $region9
    $region8: #{tpu_custom_call.1} parent=1 // pred_region
      _
    $region9: #{tpu_custom_call.1} parent=1 // pred_fallthru
      _
    // Predicated region
    $region10: #{tpu_custom_call.1} parent=1 // pred_check
      _
    $region11: #{tpu_custom_call.1} parent=1 // pred_check_branch
      %15 = sbr.rel (0) target = $region13
    $region12: #{tpu_custom_call.1} parent=1 // pred_region
      _
    $region13: #{tpu_custom_call.1} parent=1 // pred_fallthru
      _
    // Predicated region
    $region14: #{tpu_custom_call.1} parent=1 // pred_check
      _
    $region15: #{tpu_custom_call.1} parent=1 // pred_check_branch
      %17 = sbr.rel (0) target = $region17
    $region16: #{tpu_custom_call.1} parent=1 // pred_region
      _
    $region17: #{tpu_custom_call.1} parent=1 // pred_fallthru
      _
    %v18 = vld [vmem:[%s0] sm:$0xff]
    %v19 = vld [vmem:[%s0 + $0x8] sm:$0xff]
    %v20 = vld [vmem:[%s0 + $0x10] sm:$0xff]
    %v21 = vld [vmem:[%s0 + $0x18] sm:$0xff]
    %22 = vst [vmem:[#allocation2] sm:$0xff] %v18
    %23 = vst [vmem:[#allocation2 + $0x8] sm:$0xff] %v19
    %24 = vst [vmem:[#allocation2 + $0x10] sm:$0xff] %v20
    %25 = vst [vmem:[#allocation2 + $0x18] sm:$0xff] %v21
    %v26 = vld [vmem:[%s3] sm:$0xff]
    %v27 = vld [vmem:[%s3 + $0x8] sm:$0xff]
    %v28 = vld [vmem:[%s3 + $0x10] sm:$0xff]
    %v29 = vld [vmem:[%s3 + $0x18] sm:$0xff]
    %31 = vset.pattern.permute.xlu0 0
    %32 = vperm.xlu0 %31, %v26
    %v33 = vpop.permute.xlu0 %32
    %36 = vset.pattern.permute.xlu0 0
    %37 = vperm.xlu0 %36, %v27
    %v38 = vpop.permute.xlu0 %37
    %41 = vset.pattern.permute.xlu0 0
    %42 = vperm.xlu0 %41, %v28
    %v43 = vpop.permute.xlu0 %42
    %46 = vset.pattern.permute.xlu0 0
    %47 = vperm.xlu0 %46, %v29
    %v48 = vpop.permute.xlu0 %47
    %v50 = vmul.f32 %v33, %v18
    %v51 = vmul.f32 %v38, %v19
    %v52 = vmul.f32 %v43, %v20
    %v53 = vmul.f32 %v48, %v21
    %v54 = vadd.f32 %v50, %v51
    %v55 = vadd.f32 %v54, %v52
    %v56 = vadd.f32 %v55, %v53
    %v57 = vrot.slane %v56, 4
    %v58 = vadd.f32 %v56, %v57
    %v59 = vrot.slane %v58, 2
    %v60 = vadd.f32 %v58, %v59
    %v61 = vrot.slane %v60, 1
    %v62 = vadd.f32 %v60, %v61
    %v63 = vld [vmem:[%s1] sm:$0xff]
    %v64 = vld [vmem:[%s1 + $0x8] sm:$0xff]
    %v65 = vld [vmem:[%s1 + $0x10] sm:$0xff]
    %v66 = vld [vmem:[%s1 + $0x18] sm:$0xff]
    %v67 = vld [vmem:[#allocation2] sm:$0xff]
    %v68 = vld [vmem:[#allocation2 + $0x8] sm:$0xff]
    %v69 = vld [vmem:[#allocation2 + $0x10] sm:$0xff]
    %v70 = vld [vmem:[#allocation2 + $0x18] sm:$0xff]
    %vm71 = vcmask 261120
    %v73 = vsel %vm71, %v63, 0
    %v76 = vsel %vm71, %v64, 0
    %v79 = vsel %vm71, %v65, 0
    %v82 = vsel %vm71, %v66, 0
    %84 = vmatpush.msra.mxu0 0.0
    %85 = vmatpush.msra.mxu0 0.0
    %86 = vmatpush.msra.mxu0 0.0
    %87 = vmatpush.msra.mxu0 0.0
    %88 = vmatpush.msra.mxu0 0.0
    %89 = vmatpush.msra.mxu0 0.0
    %90 = vmatpush.msra.mxu0 0.0
    %91 = vmatpush.msra.mxu0 0.0
    %92 = vmatpush.msra.mxu0 0.0
    %93 = vmatpush.msra.mxu0 0.0
    %94 = vmatpush.msra.mxu0 0.0
    %95 = vmatpush.msra.mxu0 0.0
    %96 = vmatpush.msra.mxu0 %v70
    %97 = vmatpush.msra.mxu0 %v69
    %98 = vmatpush.msra.mxu0 %v68
    %99 = vmatpush.msra.mxu0 %v67
    %100 = vmatmul.f32.gmra.mxu0 %v73
    %v101 = vpop.f32.mrf.mxu0
    %v102 = vadd.f32 0.0, %v101
    %103 = vmatmul.f32.gmra.mxu0 %v76
    %v104 = vpop.f32.mrf.mxu0
    %v105 = vadd.f32 0.0, %v104
    %106 = vmatmul.f32.gmra.mxu0 %v79
    %v107 = vpop.f32.mrf.mxu0
    %v108 = vadd.f32 0.0, %v107
    %109 = vmatmul.f32.gmra.mxu0 %v82
    %v110 = vpop.f32.mrf.mxu0
    %v111 = vadd.f32 0.0, %v110
    %112 = vdwg.mxu0
    %v113 = vceil.f32 %v102
    %v114 = vceil.f32 %v105
    %v115 = vceil.f32 %v108
    %v116 = vceil.f32 %v111
    %117 = vst [vmem:[#allocation2 + $0x20] sm:$0xff] %v113
    %118 = vst [vmem:[#allocation2 + $0x28] sm:$0xff] %v114
    %119 = vst [vmem:[#allocation2 + $0x30] sm:$0xff] %v115
    %120 = vst [vmem:[#allocation2 + $0x38] sm:$0xff] %v116
    %v121 = vld [vmem:[%s3 + $0x20] sm:$0xff]
    %v122 = vld [vmem:[%s3 + $0x28] sm:$0xff]
    %v123 = vld [vmem:[%s3 + $0x30] sm:$0xff]
    %v124 = vld [vmem:[%s3 + $0x38] sm:$0xff]
    %126 = vset.pattern.permute.xlu0 0
    %127 = vperm.xlu0 %126, %v121
    %v128 = vpop.permute.xlu0 %127
    %131 = vset.pattern.permute.xlu0 0
    %132 = vperm.xlu0 %131, %v122
    %v133 = vpop.permute.xlu0 %132
    %136 = vset.pattern.permute.xlu0 0
    %137 = vperm.xlu0 %136, %v123
    %v138 = vpop.permute.xlu0 %137
    %141 = vset.pattern.permute.xlu0 0
    %142 = vperm.xlu0 %141, %v124
    %v143 = vpop.permute.xlu0 %142
    %v145 = vmul.f32 %v128, %v113
    %v146 = vmul.f32 %v133, %v114
    %v147 = vmul.f32 %v138, %v115
    %v148 = vmul.f32 %v143, %v116
    %v149 = vadd.f32 %v145, %v146
    %v150 = vadd.f32 %v149, %v147
    %v151 = vadd.f32 %v150, %v148
    %v152 = vrot.slane %v151, 4
    %v153 = vadd.f32 %v151, %v152
    %v154 = vrot.slane %v153, 2
    %v155 = vadd.f32 %v153, %v154
    %v156 = vrot.slane %v155, 1
    %v157 = vadd.f32 %v155, %v156
    %v158 = vadd.f32 %v62, %v157
    %v159 = vld [vmem:[%s2] sm:$0xff]
    %v160 = vld [vmem:[%s2 + $0x8] sm:$0xff]
    %v161 = vld [vmem:[%s2 + $0x10] sm:$0xff]
    %v162 = vld [vmem:[%s2 + $0x18] sm:$0xff]
    %v163 = vld [vmem:[#allocation2] sm:$0xff]
    %v164 = vld [vmem:[#allocation2 + $0x8] sm:$0xff]
    %v165 = vld [vmem:[#allocation2 + $0x10] sm:$0xff]
    %v166 = vld [vmem:[#allocation2 + $0x18] sm:$0xff]
    %v167 = vld [vmem:[#allocation2 + $0x20] sm:$0xff]
    %v168 = vld [vmem:[#allocation2 + $0x28] sm:$0xff]
    %v169 = vld [vmem:[#allocation2 + $0x30] sm:$0xff]
    %v170 = vld [vmem:[#allocation2 + $0x38] sm:$0xff]
    %vm171 = vcmask 523264
    %v173 = vsel %vm171, %v159, 0
    %v176 = vsel %vm171, %v160, 0
    %v179 = vsel %vm171, %v161, 0
    %v182 = vsel %vm171, %v162, 0
    %184 = vmatpush.msra.mxu0 0.0
    %185 = vmatpush.msra.mxu0 0.0
    %186 = vmatpush.msra.mxu0 0.0
    %187 = vmatpush.msra.mxu0 0.0
    %188 = vmatpush.msra.mxu0 0.0
    %189 = vmatpush.msra.mxu0 0.0
    %190 = vmatpush.msra.mxu0 0.0
    %191 = vmatpush.msra.mxu0 0.0
    %192 = vmatpush.msra.mxu0 %v170
    %193 = vmatpush.msra.mxu0 %v169
    %194 = vmatpush.msra.mxu0 %v168
    %195 = vmatpush.msra.mxu0 %v167
    %196 = vmatpush.msra.mxu0 %v166
    %197 = vmatpush.msra.mxu0 %v165
    %198 = vmatpush.msra.mxu0 %v164
    %199 = vmatpush.msra.mxu0 %v163
    %200 = vmatmul.f32.gmra.mxu0 %v173
    %v201 = vpop.f32.mrf.mxu0
    %v202 = vadd.f32 0.0, %v201
    %203 = vmatmul.f32.gmra.mxu0 %v176
    %v204 = vpop.f32.mrf.mxu0
    %v205 = vadd.f32 0.0, %v204
    %206 = vmatmul.f32.gmra.mxu0 %v179
    %v207 = vpop.f32.mrf.mxu0
    %v208 = vadd.f32 0.0, %v207
    %209 = vmatmul.f32.gmra.mxu0 %v182
    %v210 = vpop.f32.mrf.mxu0
    %v211 = vadd.f32 0.0, %v210
    %212 = vdwg.mxu0
    %v213 = vceil.f32 %v202
    %v214 = vceil.f32 %v205
    %v215 = vceil.f32 %v208
    %v216 = vceil.f32 %v211
    %217 = vst [vmem:[#allocation2 + $0x40] sm:$0xff] %v213
    %218 = vst [vmem:[#allocation2 + $0x48] sm:$0xff] %v214
    %219 = vst [vmem:[#allocation2 + $0x50] sm:$0xff] %v215
    %220 = vst [vmem:[#allocation2 + $0x58] sm:$0xff] %v216
    %v221 = vld [vmem:[%s3 + $0x40] sm:$0xff]
    %v222 = vld [vmem:[%s3 + $0x48] sm:$0xff]
    %v223 = vld [vmem:[%s3 + $0x50] sm:$0xff]
    %v224 = vld [vmem:[%s3 + $0x58] sm:$0xff]
    %226 = vset.pattern.permute.xlu0 0
    %227 = vperm.xlu0 %226, %v221
    %v228 = vpop.permute.xlu0 %227
    %231 = vset.pattern.permute.xlu0 0
    %232 = vperm.xlu0 %231, %v222
    %v233 = vpop.permute.xlu0 %232
    %236 = vset.pattern.permute.xlu0 0
    %237 = vperm.xlu0 %236, %v223
    %v238 = vpop.permute.xlu0 %237
    %241 = vset.pattern.permute.xlu0 0
    %242 = vperm.xlu0 %241, %v224
    %v243 = vpop.permute.xlu0 %242
    %v245 = vmul.f32 %v228, %v213
    %v246 = vmul.f32 %v233, %v214
    %v247 = vmul.f32 %v238, %v215
    %v248 = vmul.f32 %v243, %v216
    %v249 = vadd.f32 %v245, %v246
    %v250 = vadd.f32 %v249, %v247
    %v251 = vadd.f32 %v250, %v248
    %v252 = vrot.slane %v251, 4
    %v253 = vadd.f32 %v251, %v252
    %v254 = vrot.slane %v253, 2
    %v255 = vadd.f32 %v253, %v254
    %v256 = vrot.slane %v255, 1
    %v257 = vadd.f32 %v255, %v256
    %v258 = vadd.f32 %v158, %v257
    %259 = vst [vmem:[#allocation3] sm:$0x1] %v258
    // Predicated region
    $region18: #{tpu_custom_call.1} parent=1 // pred_check
      _
    $region19: #{tpu_custom_call.1} parent=1 // pred_check_branch
      %261 = sbr.rel (0) target = $region21
    $region20: #{tpu_custom_call.1} parent=1 // pred_region
      %263 = vsyncadd [#allocation4], 0
      %s265 = sshll.u32 [#allocation3], 4
      %s266 = int_to_ptr.vmem [resolvable:$true] %s265
      %s267 = sshll.u32 %s4, 4
      %s268 = int_to_ptr.hbm [resolvable:$true] %s267
      %270 = dma.vmem_to_hbm [thread:$0]  %s266, 16, %s268, [#allocation4]
    $region21: #{tpu_custom_call.1} parent=1 // pred_fallthru
      _
    // Predicated region
    $region22: #{tpu_custom_call.1} parent=1 // pred_check
      _
    $region23: #{tpu_custom_call.1} parent=1 // pred_check_branch
      %272 = sbr.rel (0) target = $region25
    $region24: #{tpu_custom_call.1} parent=1 // pred_region
      %274 = dma.done [#allocation4], 16
    $region25: #{tpu_custom_call.1} parent=1 // pred_fallthru
      _
    %275 = vsyncpa [#allocation4], 1

</llo_original>
